<compile_context>
chip_gen: v5e
topology: v5e:2x2
jax: 0.10.0
libtpu: 0.0.40
codegen_flags: <defaults>
</compile_context>

<pallas_src>
import functools

import jax
import jax.numpy as jnp
import numpy as np
from jax import lax
from jax.experimental import pallas as pl
from jax.experimental.pallas import tpu as pltpu


def _round_up(x, m):
    return (x + m - 1) // m * m


def _vmem_budget_bytes():
    """~85% of physical per-core VMEM (fallback: a 64 MiB chip)."""
    try:
        cap = int(pltpu.get_tpu_info().vmem_capacity_bytes)
    except Exception:
        cap = 64 * 1024 * 1024
    return int(cap * 0.85)


# ---------------------------------------------------------------------------
# Kernels
# ---------------------------------------------------------------------------
def _mln_fused_kernel(wt_ref, init_ref, add_ref, out_ref, *,
                      threshold, steepness, num_steps, unroll):
    """Whole T-step recurrence in one kernel invocation (all VMEM resident)."""

    def step(t, x):
        y = jnp.dot(x.astype(wt_ref.dtype), wt_ref[...],
                    preferred_element_type=jnp.float32)
        y = jnp.where(y >= threshold, y, 0.0)
        y = jnp.tanh(steepness * y)
        # next-step sensory drive (precomputed, zero at the final step) + clamp
        y = y + add_ref[t]
        y = jnp.minimum(y, 1.0)
        out_ref[t] = y
        return y

    lax.fori_loop(0, num_steps, step, init_ref[...], unroll=unroll)


def _mln_stream_kernel(wt_ref, init_ref, add_ref, out_ref, state_ref, *,
                       threshold, steepness):
    """One timestep per grid iteration; state carried in VMEM scratch."""
    t = pl.program_id(0)

    @pl.when(t == 0)
    def _():
        state_ref[...] = init_ref[...]

    x = jnp.dot(state_ref[...].astype(wt_ref.dtype), wt_ref[...],
                preferred_element_type=jnp.float32)
    x = jnp.where(x >= threshold, x, 0.0)
    x = jnp.tanh(steepness * x)
    x = x + add_ref[0]
    x = jnp.minimum(x, 1.0)
    out_ref[0] = x
    state_ref[...] = x


# ---------------------------------------------------------------------------
# Wrapper
# ---------------------------------------------------------------------------
def multilayered_network_forward(all_weights, sensory_indices, inputs,
                                 num_layers=2, threshold=0.01,
                                 tanh_steepness=5.0,
                                 weight_dtype=jnp.bfloat16):
    """JAX/Pallas equivalent of MultilayeredNetwork.forward."""
    squeeze = False
    if inputs.ndim == 2:
        inputs = inputs[None]
        squeeze = True
    B, _, t_in = inputs.shape
    N = all_weights.shape[0]
    T = int(num_layers)
    assert t_in >= T, "need at least num_layers time steps of input"

    B_p = _round_up(B, 8)      # full sublane tiles (MXU rows)
    N_p = _round_up(N, 128)    # full lane tiles (lane-dense stores)
    sensory_indices = jnp.asarray(sensory_indices, jnp.int32)

    # -------------- glue (plain JAX): clamp + scatter + pad ----------------
    inp = inputs[:, :, :T].astype(jnp.float32)
    inp = jnp.where(inp >= threshold, inp, 0.0)
    inp = jnp.where(inp > 1.0, 1.0, inp)
    inp_t = jnp.transpose(inp, (2, 0, 1))                    # (T, B, n_sens)

    # time-0 scatter: index_add semantics (duplicates accumulate)
    init = jnp.zeros((B, N), jnp.float32).at[:, sensory_indices].add(inp_t[0])
    # later steps: advanced-index assignment semantics (x[idx] = x[idx] + v)
    if T > 1:
        later = jnp.zeros((T - 1, B, N), jnp.float32)
        later = later.at[:, :, sensory_indices].set(inp_t[1:])
    else:
        later = jnp.zeros((0, B, N), jnp.float32)
    adds = jnp.concatenate([later, jnp.zeros((1, B, N), jnp.float32)], axis=0)

    init = jnp.pad(init, ((0, B_p - B), (0, N_p - N)))
    adds = jnp.pad(adds, ((0, 0), (0, B_p - B), (0, N_p - N)))

    # transposed, padded (and optionally bf16) connectome: update is state @ WT
    wt = jnp.pad(all_weights.astype(jnp.float32),
                 ((0, N_p - N), (0, N_p - N))).T.astype(weight_dtype)

    # -------------- choose kernel form from the VMEM budget ----------------
    budget = _vmem_budget_bytes()
    wbytes = np.dtype(weight_dtype).itemsize
    slack = 2 * 1024 * 1024
    fused_bytes = (N_p * N_p * wbytes + B_p * N_p * 4
                   + 2 * T * B_p * N_p * 4 + B_p * N_p * 4 + slack)
    stream_bytes = (N_p * N_p * wbytes + B_p * N_p * 4
                    + 2 * 2 * B_p * N_p * 4 + B_p * N_p * 4 + slack)
    # TODO(synk): for connectomes whose (N, N) weights exceed VMEM even
    # single-buffered in bf16 (stream_bytes > budget), stream weight tiles
    # from HBM each step (int8 on v5e/v6e, fp8 on v7x) — not implemented.
    del stream_bytes

    if fused_bytes <= budget:
        # Gridless fused kernel: zero per-step pipeline overhead, nothing is
        # double-buffered (everything sits once in VMEM).
        kernel = functools.partial(
            _mln_fused_kernel, threshold=float(threshold),
            steepness=float(tanh_steepness), num_steps=T,
            unroll=bool(T <= 8))
        acts_tbn = pl.pallas_call(
            kernel,
            out_shape=jax.ShapeDtypeStruct((T, B_p, N_p), jnp.float32),
            in_specs=[pl.BlockSpec(memory_space=pltpu.MemorySpace.VMEM)] * 3,
            out_specs=pl.BlockSpec(memory_space=pltpu.MemorySpace.VMEM),
            compiler_params=pltpu.CompilerParams(vmem_limit_bytes=budget),
        )(wt, init, adds)
    else:
        # Grid over T; constant-index blocks (weights, init) single-buffered.
        kernel = functools.partial(
            _mln_stream_kernel, threshold=float(threshold),
            steepness=float(tanh_steepness))
        acts_tbn = pl.pallas_call(
            kernel,
            out_shape=jax.ShapeDtypeStruct((T, B_p, N_p), jnp.float32),
            grid_spec=pltpu.PrefetchScalarGridSpec(
                num_scalar_prefetch=0,
                grid=(T,),
                in_specs=[
                    pl.BlockSpec((N_p, N_p), lambda t: (0, 0),
                                 pipeline_mode=pl.Buffered(1)),
                    pl.BlockSpec((B_p, N_p), lambda t: (0, 0),
                                 pipeline_mode=pl.Buffered(1)),
                    pl.BlockSpec((1, B_p, N_p), lambda t: (t, 0, 0)),
                ],
                out_specs=pl.BlockSpec((1, B_p, N_p), lambda t: (t, 0, 0)),
                scratch_shapes=[pltpu.VMEM((B_p, N_p), jnp.float32)],
            ),
            compiler_params=pltpu.CompilerParams(
                dimension_semantics=("arbitrary",),
                vmem_limit_bytes=budget),
        )(wt, init, adds)

    acts = jnp.transpose(acts_tbn[:, :B, :N], (1, 2, 0))     # (B, N, T)
    if squeeze:
        acts = acts[0]
    return acts


# ---------------------------------------------------------------------------
# References
# ---------------------------------------------------------------------------
def _ref_forward(W, sensory_indices, inputs, num_layers, threshold, steep):
    """Pure NumPy transcription of the PyTorch forward (dense f32 weights)."""
    W = np.asarray(W, np.float32)
    inputs = np.asarray(inputs, np.float32)
    idx = np.asarray(sensory_indices)
    B = inputs.shape[0]
    N = W.shape[0]
    outs = []
    for b in range(B):
        inp = inputs[b].copy()
        inp = np.where(inp >= threshold, inp, 0.0)
        inp = np.where(inp > 1.0, 1.0, inp)
        full = np.zeros((N,), np.float32)
        np.add.at(full, idx, inp[:, 0])
        x = W @ full
        x = np.where(x >= threshold, x, 0.0)
        x = np.tanh(steep * x)
        if num_layers > 1:
            x = x.copy()
            x[idx] = x[idx] + inp[:, 1]
            x = np.where(x > 1.0, 1.0, x)
        acts = [x]
        for al in range(1, num_layers):
            x = W @ x
            x = np.where(x >= threshold, x, 0.0)
            x = np.tanh(steep * x)
            if al != num_layers - 1:
                x = x.copy()
                x[idx] = x[idx] + inp[:, al + 1]
                x = np.where(x > 1.0, 1.0, x)
            acts.append(x)
        outs.append(np.stack(acts, axis=-1))
    return np.stack(outs, axis=0)


def _ref_forward_jax(W, sensory_indices, inputs, num_layers, threshold, steep,
                     weight_dtype):
    """Pure-JAX reference with the same precision choices as the kernel."""
    if inputs.ndim == 2:
        inputs = inputs[None]
    idx = jnp.asarray(sensory_indices, jnp.int32)
    inp = inputs.astype(jnp.float32)
    inp = jnp.where(inp >= threshold, inp, 0.0)
    inp = jnp.where(inp > 1.0, 1.0, inp)
    B = inp.shape[0]
    N = W.shape[0]
    wt = W.astype(jnp.float32).T.astype(weight_dtype)
    x = jnp.zeros((B, N), jnp.float32).at[:, idx].add(inp[:, :, 0])
    acts = []
    for t in range(num_layers):
        x = jnp.dot(x.astype(weight_dtype), wt,
                    preferred_element_type=jnp.float32)
        x = jnp.where(x >= threshold, x, 0.0)
        x = jnp.tanh(steep * x)
        if t != num_layers - 1:
            x = x.at[:, idx].set(x[:, idx] + inp[:, :, t + 1])
            x = jnp.minimum(x, 1.0)
        acts.append(x)
    return jnp.stack(acts, axis=-1)                           # (B, N, T)


# ---------------------------------------------------------------------------
# Demo / self-test
# ---------------------------------------------------------------------------
if __name__ == "__main__":
    N = 256            # total number of neurons
    n_sens = 64        # number of sensory neurons
    B = 2              # batch size
    num_layers = 4     # temporal unroll depth
    threshold = 0.01
    tanh_steepness = 5.0

    key = jax.random.PRNGKey(0)
    k_w, k_mask, k_in = jax.random.split(key, 3)

    # Deterministic "connectome": sparse-ish dense matrix.
    W = jax.random.normal(k_w, (N, N), jnp.float32) * 0.1
    W = W * jax.random.bernoulli(k_mask, 0.1, (N, N)).astype(jnp.float32)

    sensory_indices = jnp.arange(0, 2 * n_sens, 2, dtype=jnp.int32)
    inputs = jax.random.uniform(k_in, (B, n_sens, num_layers), jnp.float32)

    # ---- full-precision (f32 weight) path vs NumPy/PyTorch semantics ------
    out_f32 = multilayered_network_forward(
        W, sensory_indices, inputs, num_layers=num_layers,
        threshold=threshold, tanh_steepness=tanh_steepness,
        weight_dtype=jnp.float32)
    out_f32 = jax.block_until_ready(out_f32)
    assert out_f32.shape == (B, N, num_layers)
    ref = _ref_forward(W, sensory_indices, inputs, num_layers,
                       threshold, tanh_steepness)
    assert np.allclose(np.asarray(out_f32), ref, atol=5e-3, rtol=0.0), \
        "f32 kernel output does not match reference"

    # ---- default fast path (bf16 weights) vs precision-matched reference --
    out_bf16 = multilayered_network_forward(
        W, sensory_indices, inputs, num_layers=num_layers,
        threshold=threshold, tanh_steepness=tanh_steepness,
        weight_dtype=jnp.bfloat16)
    out_bf16 = jax.block_until_ready(out_bf16)
    ref_bf16 = np.asarray(_ref_forward_jax(
        W, sensory_indices, inputs, num_layers, threshold, tanh_steepness,
        jnp.bfloat16))
    diff = np.abs(np.asarray(out_bf16) - ref_bf16)
    # same math modulo MXU accumulation order; robust statistics so that a
    # rare x == threshold crossing flip cannot fail the check spuriously
    assert float(diff.mean()) < 1e-3, float(diff.mean())
    assert float(np.quantile(diff, 0.99)) < 5e-3, float(np.quantile(diff, 0.99))

    # ---- 2D (unbatched) input path ----------------------------------------
    out_2d = multilayered_network_forward(
        W, sensory_indices, inputs[0], num_layers=num_layers,
        threshold=threshold, tanh_steepness=tanh_steepness,
        weight_dtype=jnp.bfloat16)
    out_2d = jax.block_until_ready(out_2d)
    assert out_2d.shape == (N, num_layers)
    assert np.allclose(np.asarray(out_2d), np.asarray(out_bf16)[0],
                       atol=1e-4, rtol=0.0)

    print("KERNEL_OK")
</pallas_src>

<mosaic_0001>
module attributes {stable_mosaic.version = 11 : i64} {
  func.func @_mln_fused_kernel(%arg0: memref<256x256xf32, #tpu.memory_space<vmem>>, %arg1: memref<8x256xf32, #tpu.memory_space<vmem>>, %arg2: memref<4x8x256xf32, #tpu.memory_space<vmem>>, %arg3: memref<4x8x256xf32, #tpu.memory_space<vmem>>) attributes {dimension_semantics = [], scalar_prefetch = 0 : i64, scratch_operands = 0 : i64, tpu.core_type = #tpu.core_type<tc>} {
    %c0 = arith.constant 0 : index
    %c0_0 = arith.constant 0 : index
    %0 = vector.load %arg1[%c0, %c0_0] : memref<8x256xf32, #tpu.memory_space<vmem>>, vector<8x256xf32>
    %c0_i32 = arith.constant 0 : i32
    %c0_1 = arith.constant 0 : index
    %c0_2 = arith.constant 0 : index
    %1 = vector.load %arg0[%c0_1, %c0_2] : memref<256x256xf32, #tpu.memory_space<vmem>>, vector<256x256xf32>
    %cst = arith.constant dense<0.000000e+00> : vector<8x256xf32>
    %2 = tpu.matmul %0, %1, %cst {dimension_numbers = #tpu.dot_dimension_numbers<[1], [0], [0], [1], [0, 0, 1, 1], [], []>} : vector<8x256xf32>, vector<256x256xf32>, vector<8x256xf32> -> vector<8x256xf32>
    %cst_3 = arith.constant 0.00999999977 : f32
    %3 = vector.broadcast %cst_3 : f32 to vector<8x256xf32>
    %4 = arith.cmpf oge, %2, %3 : vector<8x256xf32>
    %cst_4 = arith.constant 0.000000e+00 : f32
    %5 = vector.broadcast %cst_4 : f32 to vector<8x256xf32>
    %6 = arith.select %4, %2, %5 : vector<8x256xi1>, vector<8x256xf32>
    %cst_5 = arith.constant 5.000000e+00 : f32
    %7 = vector.broadcast %cst_5 : f32 to vector<8x256xf32>
    %8 = arith.mulf %7, %6 : vector<8x256xf32>
    %9 = math.tanh %8 : vector<8x256xf32>
    %10 = arith.index_cast %c0_i32 : i32 to index
    %c0_6 = arith.constant 0 : index
    %c0_7 = arith.constant 0 : index
    %11 = vector.load %arg2[%10, %c0_6, %c0_7] : memref<4x8x256xf32, #tpu.memory_space<vmem>>, vector<1x8x256xf32>
    %12 = vector.shape_cast %11 : vector<1x8x256xf32> to vector<8x256xf32>
    %13 = arith.addf %9, %12 : vector<8x256xf32>
    %cst_8 = arith.constant 1.000000e+00 : f32
    %14 = vector.broadcast %cst_8 : f32 to vector<8x256xf32>
    %15 = arith.minimumf %13, %14 : vector<8x256xf32>
    %16 = arith.index_cast %c0_i32 : i32 to index
    %c0_9 = arith.constant 0 : index
    %c0_10 = arith.constant 0 : index
    %17 = vector.load %arg3[%16, %c0_9, %c0_10] : memref<4x8x256xf32, #tpu.memory_space<vmem>>, vector<1x8x256xf32>
    %18 = vector.shape_cast %17 : vector<1x8x256xf32> to vector<8x256xf32>
    %19 = vector.shape_cast %15 : vector<8x256xf32> to vector<1x8x256xf32>
    tpu.vector_store %arg3[%16, %c0_9, %c0_10], %19 {strides = array<i32>} : memref<4x8x256xf32, #tpu.memory_space<vmem>>, vector<1x8x256xf32>,
    %c1_i32 = arith.constant 1 : i32
    %c0_11 = arith.constant 0 : index
    %c0_12 = arith.constant 0 : index
    %20 = vector.load %arg0[%c0_11, %c0_12] : memref<256x256xf32, #tpu.memory_space<vmem>>, vector<256x256xf32>
    %cst_13 = arith.constant dense<0.000000e+00> : vector<8x256xf32>
    %21 = tpu.matmul %15, %20, %cst_13 {dimension_numbers = #tpu.dot_dimension_numbers<[1], [0], [0], [1], [0, 0, 1, 1], [], []>} : vector<8x256xf32>, vector<256x256xf32>, vector<8x256xf32> -> vector<8x256xf32>
    %cst_14 = arith.constant 0.00999999977 : f32
    %22 = vector.broadcast %cst_14 : f32 to vector<8x256xf32>
    %23 = arith.cmpf oge, %21, %22 : vector<8x256xf32>
    %cst_15 = arith.constant 0.000000e+00 : f32
    %24 = vector.broadcast %cst_15 : f32 to vector<8x256xf32>
    %25 = arith.select %23, %21, %24 : vector<8x256xi1>, vector<8x256xf32>
    %cst_16 = arith.constant 5.000000e+00 : f32
    %26 = vector.broadcast %cst_16 : f32 to vector<8x256xf32>
    %27 = arith.mulf %26, %25 : vector<8x256xf32>
    %28 = math.tanh %27 : vector<8x256xf32>
    %29 = arith.index_cast %c1_i32 : i32 to index
    %c0_17 = arith.constant 0 : index
    %c0_18 = arith.constant 0 : index
    %30 = vector.load %arg2[%29, %c0_17, %c0_18] : memref<4x8x256xf32, #tpu.memory_space<vmem>>, vector<1x8x256xf32>
    %31 = vector.shape_cast %30 : vector<1x8x256xf32> to vector<8x256xf32>
    %32 = arith.addf %28, %31 : vector<8x256xf32>
    %cst_19 = arith.constant 1.000000e+00 : f32
    %33 = vector.broadcast %cst_19 : f32 to vector<8x256xf32>
    %34 = arith.minimumf %32, %33 : vector<8x256xf32>
    %35 = arith.index_cast %c1_i32 : i32 to index
    %c0_20 = arith.constant 0 : index
    %c0_21 = arith.constant 0 : index
    %36 = vector.load %arg3[%35, %c0_20, %c0_21] : memref<4x8x256xf32, #tpu.memory_space<vmem>>, vector<1x8x256xf32>
    %37 = vector.shape_cast %36 : vector<1x8x256xf32> to vector<8x256xf32>
    %38 = vector.shape_cast %34 : vector<8x256xf32> to vector<1x8x256xf32>
    tpu.vector_store %arg3[%35, %c0_20, %c0_21], %38 {strides = array<i32>} : memref<4x8x256xf32, #tpu.memory_space<vmem>>, vector<1x8x256xf32>,
    %c2_i32 = arith.constant 2 : i32
    %c0_22 = arith.constant 0 : index
    %c0_23 = arith.constant 0 : index
    %39 = vector.load %arg0[%c0_22, %c0_23] : memref<256x256xf32, #tpu.memory_space<vmem>>, vector<256x256xf32>
    %cst_24 = arith.constant dense<0.000000e+00> : vector<8x256xf32>
    %40 = tpu.matmul %34, %39, %cst_24 {dimension_numbers = #tpu.dot_dimension_numbers<[1], [0], [0], [1], [0, 0, 1, 1], [], []>} : vector<8x256xf32>, vector<256x256xf32>, vector<8x256xf32> -> vector<8x256xf32>
    %cst_25 = arith.constant 0.00999999977 : f32
    %41 = vector.broadcast %cst_25 : f32 to vector<8x256xf32>
    %42 = arith.cmpf oge, %40, %41 : vector<8x256xf32>
    %cst_26 = arith.constant 0.000000e+00 : f32
    %43 = vector.broadcast %cst_26 : f32 to vector<8x256xf32>
    %44 = arith.select %42, %40, %43 : vector<8x256xi1>, vector<8x256xf32>
    %cst_27 = arith.constant 5.000000e+00 : f32
    %45 = vector.broadcast %cst_27 : f32 to vector<8x256xf32>
    %46 = arith.mulf %45, %44 : vector<8x256xf32>
    %47 = math.tanh %46 : vector<8x256xf32>
    %48 = arith.index_cast %c2_i32 : i32 to index
    %c0_28 = arith.constant 0 : index
    %c0_29 = arith.constant 0 : index
    %49 = vector.load %arg2[%48, %c0_28, %c0_29] : memref<4x8x256xf32, #tpu.memory_space<vmem>>, vector<1x8x256xf32>
    %50 = vector.shape_cast %49 : vector<1x8x256xf32> to vector<8x256xf32>
    %51 = arith.addf %47, %50 : vector<8x256xf32>
    %cst_30 = arith.constant 1.000000e+00 : f32
    %52 = vector.broadcast %cst_30 : f32 to vector<8x256xf32>
    %53 = arith.minimumf %51, %52 : vector<8x256xf32>
    %54 = arith.index_cast %c2_i32 : i32 to index
    %c0_31 = arith.constant 0 : index
    %c0_32 = arith.constant 0 : index
    %55 = vector.load %arg3[%54, %c0_31, %c0_32] : memref<4x8x256xf32, #tpu.memory_space<vmem>>, vector<1x8x256xf32>
    %56 = vector.shape_cast %55 : vector<1x8x256xf32> to vector<8x256xf32>
    %57 = vector.shape_cast %53 : vector<8x256xf32> to vector<1x8x256xf32>
    tpu.vector_store %arg3[%54, %c0_31, %c0_32], %57 {strides = array<i32>} : memref<4x8x256xf32, #tpu.memory_space<vmem>>, vector<1x8x256xf32>,
    %c3_i32 = arith.constant 3 : i32
    %c0_33 = arith.constant 0 : index
    %c0_34 = arith.constant 0 : index
    %58 = vector.load %arg0[%c0_33, %c0_34] : memref<256x256xf32, #tpu.memory_space<vmem>>, vector<256x256xf32>
    %cst_35 = arith.constant dense<0.000000e+00> : vector<8x256xf32>
    %59 = tpu.matmul %53, %58, %cst_35 {dimension_numbers = #tpu.dot_dimension_numbers<[1], [0], [0], [1], [0, 0, 1, 1], [], []>} : vector<8x256xf32>, vector<256x256xf32>, vector<8x256xf32> -> vector<8x256xf32>
    %cst_36 = arith.constant 0.00999999977 : f32
    %60 = vector.broadcast %cst_36 : f32 to vector<8x256xf32>
    %61 = arith.cmpf oge, %59, %60 : vector<8x256xf32>
    %cst_37 = arith.constant 0.000000e+00 : f32
    %62 = vector.broadcast %cst_37 : f32 to vector<8x256xf32>
    %63 = arith.select %61, %59, %62 : vector<8x256xi1>, vector<8x256xf32>
    %cst_38 = arith.constant 5.000000e+00 : f32
    %64 = vector.broadcast %cst_38 : f32 to vector<8x256xf32>
    %65 = arith.mulf %64, %63 : vector<8x256xf32>
    %66 = math.tanh %65 : vector<8x256xf32>
    %67 = arith.index_cast %c3_i32 : i32 to index
    %c0_39 = arith.constant 0 : index
    %c0_40 = arith.constant 0 : index
    %68 = vector.load %arg2[%67, %c0_39, %c0_40] : memref<4x8x256xf32, #tpu.memory_space<vmem>>, vector<1x8x256xf32>
    %69 = vector.shape_cast %68 : vector<1x8x256xf32> to vector<8x256xf32>
    %70 = arith.addf %66, %69 : vector<8x256xf32>
    %cst_41 = arith.constant 1.000000e+00 : f32
    %71 = vector.broadcast %cst_41 : f32 to vector<8x256xf32>
    %72 = arith.minimumf %70, %71 : vector<8x256xf32>
    %73 = arith.index_cast %c3_i32 : i32 to index
    %c0_42 = arith.constant 0 : index
    %c0_43 = arith.constant 0 : index
    %74 = vector.load %arg3[%73, %c0_42, %c0_43] : memref<4x8x256xf32, #tpu.memory_space<vmem>>, vector<1x8x256xf32>
    %75 = vector.shape_cast %74 : vector<1x8x256xf32> to vector<8x256xf32>
    %76 = vector.shape_cast %72 : vector<8x256xf32> to vector<1x8x256xf32>
    tpu.vector_store %arg3[%73, %c0_42, %c0_43], %76 {strides = array<i32>} : memref<4x8x256xf32, #tpu.memory_space<vmem>>, vector<1x8x256xf32>,
    %c4_i32 = arith.constant 4 : i32
    return
  }
}

</mosaic_0001>

<llo_original>
// kernel: tpu_custom_call.1
$region0: #{tpu_custom_call.1}
  #allocation0 [shape = 'u32[]', space=smem, size = 0x4, offset = 0x4, fixed_abs, tag = 'smem constant byte address 0x4 - core index']
  #allocation1 [shape = 'u32[72,128]{1,0:T(1,128)}', space=vmem, size = 0x9000, scoped, tag = 'internal scratch']
  %s0 = inlined_call_operand.hbm [shape: f32[256,256], index: 0, kind: input, shape index: {}]
  %s1 = inlined_call_operand.hbm [shape: f32[8,256], index: 1, kind: input, shape index: {}]
  %s2 = inlined_call_operand.hbm [shape: f32[4,8,256], index: 2, kind: input, shape index: {}]
  %s3 = inlined_call_operand.hbm [shape: f32[4,8,256], index: 3, kind: output, shape index: {}]
  %s4 = sld [smem:[#allocation0]]
  $region34: #{tpu_custom_call.1} parent=0
    _
  %s6 = ssub.s32 1, %s4
  %s7 = scalar_select 0, %s6, %s4
  $region1: #{tpu_custom_call.1} parent=0
    #allocation2 [shape = 'u8[262144]{0}', space=vmem, size = 0x40000, scoped, tag = 'input window, operand 0, single buffered']
    #allocation3 [shape = 's32[1]{0}', space=sflag, size = 0x4, scoped, tag = 'scoped memory for tpu_custom_call.1']
    #allocation4 [shape = 's32[1]{0}', space=sflag, size = 0x4, scoped, tag = 'scoped memory for tpu_custom_call.1']
    #allocation5 [shape = 'u8[8192]{0}', space=vmem, size = 0x2000, scoped, tag = 'input window, operand 1, single buffered']
    #allocation6 [shape = 's32[1]{0}', space=sflag, size = 0x4, scoped, tag = 'scoped memory for tpu_custom_call.1']
    #allocation7 [shape = 'u8[32768]{0}', space=vmem, size = 0x8000, scoped, tag = 'input window, operand 2, single buffered']
    #allocation8 [shape = 'u8[32768]{0}', space=vmem, size = 0x8000, scoped, tag = 'output window, operand 0, single buffered']
    %8 = vsyncpa [#allocation3], 0
    %9 = vsyncpa [#allocation6], 0
    %10 = vsyncpa [#allocation4], 0
    // Predicated region
    $region2: #{tpu_custom_call.1} parent=1 // pred_check
      _
    $region3: #{tpu_custom_call.1} parent=1 // pred_check_branch
      %12 = sbr.rel (0) target = $region5
    $region4: #{tpu_custom_call.1} parent=1 // pred_region
      %14 = vsyncadd [#allocation3], 0
      %s15 = sshll.u32 %s0, 4
      %s16 = int_to_ptr.hbm [resolvable:$true] %s15
      %s17 = sshll.u32 [#allocation2], 4
      %s18 = int_to_ptr.vmem [resolvable:$true] %s17
      %23 = dma.hbm_to_vmem [thread:$0]  %s16, 8192, %s18, [#allocation3], 256, 256, 16
    $region5: #{tpu_custom_call.1} parent=1 // pred_fallthru
      _
    // Predicated region
    $region6: #{tpu_custom_call.1} parent=1 // pred_check
      _
    $region7: #{tpu_custom_call.1} parent=1 // pred_check_branch
      %25 = sbr.rel (0) target = $region9
    $region8: #{tpu_custom_call.1} parent=1 // pred_region
      %27 = vsyncadd [#allocation6], 0
      %s29 = sshll.u32 %s1, 4
      %s30 = int_to_ptr.hbm [resolvable:$true] %s29
      %s31 = sshll.u32 [#allocation5], 4
      %s32 = int_to_ptr.vmem [resolvable:$true] %s31
      %34 = dma.hbm_to_vmem [thread:$0]  %s30, 256, %s32, [#allocation6]
    $region9: #{tpu_custom_call.1} parent=1 // pred_fallthru
      _
    // Predicated region
    $region10: #{tpu_custom_call.1} parent=1 // pred_check
      _
    $region11: #{tpu_custom_call.1} parent=1 // pred_check_branch
      %36 = sbr.rel (0) target = $region13
    $region12: #{tpu_custom_call.1} parent=1 // pred_region
      %38 = vsyncadd [#allocation6], 0
      %s39 = sshll.u32 %s2, 4
      %s40 = int_to_ptr.hbm [resolvable:$true] %s39
      %s41 = sshll.u32 [#allocation7], 4
      %s42 = int_to_ptr.vmem [resolvable:$true] %s41
      %47 = dma.hbm_to_vmem [thread:$0]  %s40, 1024, %s42, [#allocation6], 256, 256, 16
    $region13: #{tpu_custom_call.1} parent=1 // pred_fallthru
      _
    // Predicated region
    $region14: #{tpu_custom_call.1} parent=1 // pred_check
      _
    $region15: #{tpu_custom_call.1} parent=1 // pred_check_branch
      %49 = sbr.rel (0) target = $region17
    $region16: #{tpu_custom_call.1} parent=1 // pred_region
      %51 = dma.done [#allocation3], 8192
    $region17: #{tpu_custom_call.1} parent=1 // pred_fallthru
      _
    // Predicated region
    $region18: #{tpu_custom_call.1} parent=1 // pred_check
      _
    $region19: #{tpu_custom_call.1} parent=1 // pred_check_branch
      %53 = sbr.rel (0) target = $region21
    $region20: #{tpu_custom_call.1} parent=1 // pred_region
      %55 = dma.done [#allocation6], 256
    $region21: #{tpu_custom_call.1} parent=1 // pred_fallthru
      _
    // Predicated region
    $region22: #{tpu_custom_call.1} parent=1 // pred_check
      _
    $region23: #{tpu_custom_call.1} parent=1 // pred_check_branch
      %57 = sbr.rel (0) target = $region25
    $region24: #{tpu_custom_call.1} parent=1 // pred_region
      %59 = dma.done [#allocation6], 1024
    $region25: #{tpu_custom_call.1} parent=1 // pred_fallthru
      _
    %v60 = vld [vmem:[#allocation5] sm:$0xff]
    %v61 = vld [vmem:[#allocation5 + $0x8] sm:$0xff]
    %v62 = vld [vmem:[#allocation2] sm:$0xff]
    %v63 = vld [vmem:[#allocation2 + $0x8] sm:$0xff]
    %v64 = vld [vmem:[#allocation2 + $0x10] sm:$0xff]
    %v65 = vld [vmem:[#allocation2 + $0x18] sm:$0xff]
    %v66 = vld [vmem:[#allocation2 + $0x20] sm:$0xff]
    %v67 = vld [vmem:[#allocation2 + $0x28] sm:$0xff]
    %v68 = vld [vmem:[#allocation2 + $0x30] sm:$0xff]
    %v69 = vld [vmem:[#allocation2 + $0x38] sm:$0xff]
    %v70 = vld [vmem:[#allocation2 + $0x40] sm:$0xff]
    %v71 = vld [vmem:[#allocation2 + $0x48] sm:$0xff]
    %v72 = vld [vmem:[#allocation2 + $0x50] sm:$0xff]
    %v73 = vld [vmem:[#allocation2 + $0x58] sm:$0xff]
    %v74 = vld [vmem:[#allocation2 + $0x60] sm:$0xff]
    %v75 = vld [vmem:[#allocation2 + $0x68] sm:$0xff]
    %v76 = vld [vmem:[#allocation2 + $0x70] sm:$0xff]
    %v77 = vld [vmem:[#allocation2 + $0x78] sm:$0xff]
    %v78 = vld [vmem:[#allocation2 + $0x80] sm:$0xff]
    %v79 = vld [vmem:[#allocation2 + $0x88] sm:$0xff]
    %v80 = vld [vmem:[#allocation2 + $0x90] sm:$0xff]
    %v81 = vld [vmem:[#allocation2 + $0x98] sm:$0xff]
    %v82 = vld [vmem:[#allocation2 + $0xa0] sm:$0xff]
    %v83 = vld [vmem:[#allocation2 + $0xa8] sm:$0xff]
    %v84 = vld [vmem:[#allocation2 + $0xb0] sm:$0xff]
    %v85 = vld [vmem:[#allocation2 + $0xb8] sm:$0xff]
    %v86 = vld [vmem:[#allocation2 + $0xc0] sm:$0xff]
    %v87 = vld [vmem:[#allocation2 + $0xc8] sm:$0xff]
    %v88 = vld [vmem:[#allocation2 + $0xd0] sm:$0xff]
    %v89 = vld [vmem:[#allocation2 + $0xd8] sm:$0xff]
    %v90 = vld [vmem:[#allocation2 + $0xe0] sm:$0xff]
    %v91 = vld [vmem:[#allocation2 + $0xe8] sm:$0xff]
    %v92 = vld [vmem:[#allocation2 + $0xf0] sm:$0xff]
    %v93 = vld [vmem:[#allocation2 + $0xf8] sm:$0xff]
    %v94 = vld [vmem:[#allocation2 + $0x100] sm:$0xff]
    %v95 = vld [vmem:[#allocation2 + $0x108] sm:$0xff]
    %v96 = vld [vmem:[#allocation2 + $0x110] sm:$0xff]
    %v97 = vld [vmem:[#allocation2 + $0x118] sm:$0xff]
    %v98 = vld [vmem:[#allocation2 + $0x120] sm:$0xff]
    %v99 = vld [vmem:[#allocation2 + $0x128] sm:$0xff]
    %v100 = vld [vmem:[#allocation2 + $0x130] sm:$0xff]
    %v101 = vld [vmem:[#allocation2 + $0x138] sm:$0xff]
    %v102 = vld [vmem:[#allocation2 + $0x140] sm:$0xff]
    %v103 = vld [vmem:[#allocation2 + $0x148] sm:$0xff]
    %v104 = vld [vmem:[#allocation2 + $0x150] sm:$0xff]
    %v105 = vld [vmem:[#allocation2 + $0x158] sm:$0xff]
    %v106 = vld [vmem:[#allocation2 + $0x160] sm:$0xff]
    %v107 = vld [vmem:[#allocation2 + $0x168] sm:$0xff]
    %v108 = vld [vmem:[#allocation2 + $0x170] sm:$0xff]
    %v109 = vld [vmem:[#allocation2 + $0x178] sm:$0xff]
    %v110 = vld [vmem:[#allocation2 + $0x180] sm:$0xff]
    %v111 = vld [vmem:[#allocation2 + $0x188] sm:$0xff]
    %v112 = vld [vmem:[#allocation2 + $0x190] sm:$0xff]
    %v113 = vld [vmem:[#allocation2 + $0x198] sm:$0xff]
    %v114 = vld [vmem:[#allocation2 + $0x1a0] sm:$0xff]
    %v115 = vld [vmem:[#allocation2 + $0x1a8] sm:$0xff]
    %v116 = vld [vmem:[#allocation2 + $0x1b0] sm:$0xff]
    %v117 = vld [vmem:[#allocation2 + $0x1b8] sm:$0xff]
    %v118 = vld [vmem:[#allocation2 + $0x1c0] sm:$0xff]
    %v119 = vld [vmem:[#allocation2 + $0x1c8] sm:$0xff]
    %v120 = vld [vmem:[#allocation2 + $0x1d0] sm:$0xff]
    %v121 = vld [vmem:[#allocation2 + $0x1d8] sm:$0xff]
    %v122 = vld [vmem:[#allocation2 + $0x1e0] sm:$0xff]
    %v123 = vld [vmem:[#allocation2 + $0x1e8] sm:$0xff]
    %v124 = vld [vmem:[#allocation2 + $0x1f0] sm:$0xff]
    %v125 = vld [vmem:[#allocation2 + $0x1f8] sm:$0xff]
    %126 = vmatpush.msra.mxu0 %v92
    %127 = vmatpush.msra.mxu0 %v90
    %128 = vmatpush.msra.mxu0 %v88
    %129 = vmatpush.msra.mxu0 %v86
    %130 = vmatpush.msra.mxu0 %v84
    %131 = vmatpush.msra.mxu0 %v82
    %132 = vmatpush.msra.mxu0 %v80
    %133 = vmatpush.msra.mxu0 %v78
    %134 = vmatpush.msra.mxu0 %v76
    %135 = vmatpush.msra.mxu0 %v74
    %136 = vmatpush.msra.mxu0 %v72
    %137 = vmatpush.msra.mxu0 %v70
    %138 = vmatpush.msra.mxu0 %v68
    %139 = vmatpush.msra.mxu0 %v66
    %140 = vmatpush.msra.mxu0 %v64
    %141 = vmatpush.msra.mxu0 %v62
    %142 = vmatmul.f32.gmra.mxu0 %v60
    %v143 = vpop.f32.mrf.mxu0
    %v144 = vadd.f32 0.0, %v143
    %145 = vdwg.mxu0
    %146 = vmatpush.msra.mxu0 %v124
    %147 = vmatpush.msra.mxu0 %v122
    %148 = vmatpush.msra.mxu0 %v120
    %149 = vmatpush.msra.mxu0 %v118
    %150 = vmatpush.msra.mxu0 %v116
    %151 = vmatpush.msra.mxu0 %v114
    %152 = vmatpush.msra.mxu0 %v112
    %153 = vmatpush.msra.mxu0 %v110
    %154 = vmatpush.msra.mxu0 %v108
    %155 = vmatpush.msra.mxu0 %v106
    %156 = vmatpush.msra.mxu0 %v104
    %157 = vmatpush.msra.mxu0 %v102
    %158 = vmatpush.msra.mxu0 %v100
    %159 = vmatpush.msra.mxu0 %v98
    %160 = vmatpush.msra.mxu0 %v96
    %161 = vmatpush.msra.mxu0 %v94
    %162 = vmatmul.f32.gmra.mxu0 %v61
    %v163 = vpop.f32.mrf.mxu0
    %v164 = vadd.f32 %v144, %v163
    %165 = vdwg.mxu0
    %166 = vmatpush.msra.mxu0 %v93
    %167 = vmatpush.msra.mxu0 %v91
    %168 = vmatpush.msra.mxu0 %v89
    %169 = vmatpush.msra.mxu0 %v87
    %170 = vmatpush.msra.mxu0 %v85
    %171 = vmatpush.msra.mxu0 %v83
    %172 = vmatpush.msra.mxu0 %v81
    %173 = vmatpush.msra.mxu0 %v79
    %174 = vmatpush.msra.mxu0 %v77
    %175 = vmatpush.msra.mxu0 %v75
    %176 = vmatpush.msra.mxu0 %v73
    %177 = vmatpush.msra.mxu0 %v71
    %178 = vmatpush.msra.mxu0 %v69
    %179 = vmatpush.msra.mxu0 %v67
    %180 = vmatpush.msra.mxu0 %v65
    %181 = vmatpush.msra.mxu0 %v63
    %182 = vmatmul.f32.gmra.mxu0 %v60
    %v183 = vpop.f32.mrf.mxu0
    %v184 = vadd.f32 0.0, %v183
    %185 = vdwg.mxu0
    %186 = vmatpush.msra.mxu0 %v125
    %187 = vmatpush.msra.mxu0 %v123
    %188 = vmatpush.msra.mxu0 %v121
    %189 = vmatpush.msra.mxu0 %v119
    %190 = vmatpush.msra.mxu0 %v117
    %191 = vmatpush.msra.mxu0 %v115
    %192 = vmatpush.msra.mxu0 %v113
    %193 = vmatpush.msra.mxu0 %v111
    %194 = vmatpush.msra.mxu0 %v109
    %195 = vmatpush.msra.mxu0 %v107
    %196 = vmatpush.msra.mxu0 %v105
    %197 = vmatpush.msra.mxu0 %v103
    %198 = vmatpush.msra.mxu0 %v101
    %199 = vmatpush.msra.mxu0 %v99
    %200 = vmatpush.msra.mxu0 %v97
    %201 = vmatpush.msra.mxu0 %v95
    %202 = vmatmul.f32.gmra.mxu0 %v61
    %v203 = vpop.f32.mrf.mxu0
    %v204 = vadd.f32 %v184, %v203
    %205 = vdwg.mxu0
    %vm206 = vcmp.ge.f32.partialorder %v164, 0.01
    %vm207 = vcmp.ge.f32.partialorder %v204, 0.01
    %v208 = vsel %vm206, %v164, 0.0
    %v209 = vsel %vm207, %v204, 0.0
    %v210 = vmul.f32 %v208, 5.0
    %v211 = vmul.f32 %v209, 5.0
    %v212 = vtanh.pop %v210
    %v213 = vtanh.pop %v211
    %v214 = vld [vmem:[#allocation7] sm:$0xff]
    %v215 = vld [vmem:[#allocation7 + $0x8] sm:$0xff]
    %v216 = vadd.f32 %v212, %v214
    %v217 = vadd.f32 %v213, %v215
    %v218 = vmin.f32 %v216, 1.0
    %v219 = vmin.f32 %v217, 1.0
    %220 = vst [vmem:[#allocation8] sm:$0xff] %v218
    %221 = vst [vmem:[#allocation8 + $0x8] sm:$0xff] %v219
    %v222 = vld [vmem:[#allocation2] sm:$0xff]
    %v223 = vld [vmem:[#allocation2 + $0x8] sm:$0xff]
    %v224 = vld [vmem:[#allocation2 + $0x10] sm:$0xff]
    %v225 = vld [vmem:[#allocation2 + $0x18] sm:$0xff]
    %v226 = vld [vmem:[#allocation2 + $0x20] sm:$0xff]
    %v227 = vld [vmem:[#allocation2 + $0x28] sm:$0xff]
    %v228 = vld [vmem:[#allocation2 + $0x30] sm:$0xff]
    %v229 = vld [vmem:[#allocation2 + $0x38] sm:$0xff]
    %v230 = vld [vmem:[#allocation2 + $0x40] sm:$0xff]
    %v231 = vld [vmem:[#allocation2 + $0x48] sm:$0xff]
    %v232 = vld [vmem:[#allocation2 + $0x50] sm:$0xff]
    %v233 = vld [vmem:[#allocation2 + $0x58] sm:$0xff]
    %v234 = vld [vmem:[#allocation2 + $0x60] sm:$0xff]
    %v235 = vld [vmem:[#allocation2 + $0x68] sm:$0xff]
    %v236 = vld [vmem:[#allocation2 + $0x70] sm:$0xff]
    %v237 = vld [vmem:[#allocation2 + $0x78] sm:$0xff]
    %v238 = vld [vmem:[#allocation2 + $0x80] sm:$0xff]
    %v239 = vld [vmem:[#allocation2 + $0x88] sm:$0xff]
    %v240 = vld [vmem:[#allocation2 + $0x90] sm:$0xff]
    %v241 = vld [vmem:[#allocation2 + $0x98] sm:$0xff]
    %v242 = vld [vmem:[#allocation2 + $0xa0] sm:$0xff]
    %v243 = vld [vmem:[#allocation2 + $0xa8] sm:$0xff]
    %v244 = vld [vmem:[#allocation2 + $0xb0] sm:$0xff]
    %v245 = vld [vmem:[#allocation2 + $0xb8] sm:$0xff]
    %v246 = vld [vmem:[#allocation2 + $0xc0] sm:$0xff]
    %v247 = vld [vmem:[#allocation2 + $0xc8] sm:$0xff]
    %v248 = vld [vmem:[#allocation2 + $0xd0] sm:$0xff]
    %v249 = vld [vmem:[#allocation2 + $0xd8] sm:$0xff]
    %v250 = vld [vmem:[#allocation2 + $0xe0] sm:$0xff]
    %v251 = vld [vmem:[#allocation2 + $0xe8] sm:$0xff]
    %v252 = vld [vmem:[#allocation2 + $0xf0] sm:$0xff]
    %v253 = vld [vmem:[#allocation2 + $0xf8] sm:$0xff]
    %v254 = vld [vmem:[#allocation2 + $0x100] sm:$0xff]
    %v255 = vld [vmem:[#allocation2 + $0x108] sm:$0xff]
    %v256 = vld [vmem:[#allocation2 + $0x110] sm:$0xff]
    %v257 = vld [vmem:[#allocation2 + $0x118] sm:$0xff]
    %v258 = vld [vmem:[#allocation2 + $0x120] sm:$0xff]
    %v259 = vld [vmem:[#allocation2 + $0x128] sm:$0xff]
    %v260 = vld [vmem:[#allocation2 + $0x130] sm:$0xff]
    %v261 = vld [vmem:[#allocation2 + $0x138] sm:$0xff]
    %v262 = vld [vmem:[#allocation2 + $0x140] sm:$0xff]
    %v263 = vld [vmem:[#allocation2 + $0x148] sm:$0xff]
    %v264 = vld [vmem:[#allocation2 + $0x150] sm:$0xff]
    %v265 = vld [vmem:[#allocation2 + $0x158] sm:$0xff]
    %v266 = vld [vmem:[#allocation2 + $0x160] sm:$0xff]
    %v267 = vld [vmem:[#allocation2 + $0x168] sm:$0xff]
    %v268 = vld [vmem:[#allocation2 + $0x170] sm:$0xff]
    %v269 = vld [vmem:[#allocation2 + $0x178] sm:$0xff]
    %v270 = vld [vmem:[#allocation2 + $0x180] sm:$0xff]
    %v271 = vld [vmem:[#allocation2 + $0x188] sm:$0xff]
    %v272 = vld [vmem:[#allocation2 + $0x190] sm:$0xff]
    %v273 = vld [vmem:[#allocation2 + $0x198] sm:$0xff]
    %v274 = vld [vmem:[#allocation2 + $0x1a0] sm:$0xff]
    %v275 = vld [vmem:[#allocation2 + $0x1a8] sm:$0xff]
    %v276 = vld [vmem:[#allocation2 + $0x1b0] sm:$0xff]
    %v277 = vld [vmem:[#allocation2 + $0x1b8] sm:$0xff]
    %v278 = vld [vmem:[#allocation2 + $0x1c0] sm:$0xff]
    %v279 = vld [vmem:[#allocation2 + $0x1c8] sm:$0xff]
    %v280 = vld [vmem:[#allocation2 + $0x1d0] sm:$0xff]
    %v281 = vld [vmem:[#allocation2 + $0x1d8] sm:$0xff]
    %v282 = vld [vmem:[#allocation2 + $0x1e0] sm:$0xff]
    %v283 = vld [vmem:[#allocation2 + $0x1e8] sm:$0xff]
    %v284 = vld [vmem:[#allocation2 + $0x1f0] sm:$0xff]
    %v285 = vld [vmem:[#allocation2 + $0x1f8] sm:$0xff]
    %286 = vmatpush.msra.mxu0 %v252
    %287 = vmatpush.msra.mxu0 %v250
    %288 = vmatpush.msra.mxu0 %v248
    %289 = vmatpush.msra.mxu0 %v246
    %290 = vmatpush.msra.mxu0 %v244
    %291 = vmatpush.msra.mxu0 %v242
    %292 = vmatpush.msra.mxu0 %v240
    %293 = vmatpush.msra.mxu0 %v238
    %294 = vmatpush.msra.mxu0 %v236
    %295 = vmatpush.msra.mxu0 %v234
    %296 = vmatpush.msra.mxu0 %v232
    %297 = vmatpush.msra.mxu0 %v230
    %298 = vmatpush.msra.mxu0 %v228
    %299 = vmatpush.msra.mxu0 %v226
    %300 = vmatpush.msra.mxu0 %v224
    %301 = vmatpush.msra.mxu0 %v222
    %302 = vmatmul.f32.gmra.mxu0 %v218
    %v303 = vpop.f32.mrf.mxu0
    %v304 = vadd.f32 0.0, %v303
    %305 = vdwg.mxu0
    %306 = vmatpush.msra.mxu0 %v284
    %307 = vmatpush.msra.mxu0 %v282
    %308 = vmatpush.msra.mxu0 %v280
    %309 = vmatpush.msra.mxu0 %v278
    %310 = vmatpush.msra.mxu0 %v276
    %311 = vmatpush.msra.mxu0 %v274
    %312 = vmatpush.msra.mxu0 %v272
    %313 = vmatpush.msra.mxu0 %v270
    %314 = vmatpush.msra.mxu0 %v268
    %315 = vmatpush.msra.mxu0 %v266
    %316 = vmatpush.msra.mxu0 %v264
    %317 = vmatpush.msra.mxu0 %v262
    %318 = vmatpush.msra.mxu0 %v260
    %319 = vmatpush.msra.mxu0 %v258
    %320 = vmatpush.msra.mxu0 %v256
    %321 = vmatpush.msra.mxu0 %v254
    %322 = vmatmul.f32.gmra.mxu0 %v219
    %v323 = vpop.f32.mrf.mxu0
    %v324 = vadd.f32 %v304, %v323
    %325 = vdwg.mxu0
    %326 = vmatpush.msra.mxu0 %v253
    %327 = vmatpush.msra.mxu0 %v251
    %328 = vmatpush.msra.mxu0 %v249
    %329 = vmatpush.msra.mxu0 %v247
    %330 = vmatpush.msra.mxu0 %v245
    %331 = vmatpush.msra.mxu0 %v243
    %332 = vmatpush.msra.mxu0 %v241
    %333 = vmatpush.msra.mxu0 %v239
    %334 = vmatpush.msra.mxu0 %v237
    %335 = vmatpush.msra.mxu0 %v235
    %336 = vmatpush.msra.mxu0 %v233
    %337 = vmatpush.msra.mxu0 %v231
    %338 = vmatpush.msra.mxu0 %v229
    %339 = vmatpush.msra.mxu0 %v227
    %340 = vmatpush.msra.mxu0 %v225
    %341 = vmatpush.msra.mxu0 %v223
    %342 = vmatmul.f32.gmra.mxu0 %v218
    %v343 = vpop.f32.mrf.mxu0
    %v344 = vadd.f32 0.0, %v343
    %345 = vdwg.mxu0
    %346 = vmatpush.msra.mxu0 %v285
    %347 = vmatpush.msra.mxu0 %v283
    %348 = vmatpush.msra.mxu0 %v281
    %349 = vmatpush.msra.mxu0 %v279
    %350 = vmatpush.msra.mxu0 %v277
    %351 = vmatpush.msra.mxu0 %v275
    %352 = vmatpush.msra.mxu0 %v273
    %353 = vmatpush.msra.mxu0 %v271
    %354 = vmatpush.msra.mxu0 %v269
    %355 = vmatpush.msra.mxu0 %v267
    %356 = vmatpush.msra.mxu0 %v265
    %357 = vmatpush.msra.mxu0 %v263
    %358 = vmatpush.msra.mxu0 %v261
    %359 = vmatpush.msra.mxu0 %v259
    %360 = vmatpush.msra.mxu0 %v257
    %361 = vmatpush.msra.mxu0 %v255
    %362 = vmatmul.f32.gmra.mxu0 %v219
    %v363 = vpop.f32.mrf.mxu0
    %v364 = vadd.f32 %v344, %v363
    %365 = vdwg.mxu0
    %vm366 = vcmp.ge.f32.partialorder %v324, 0.01
    %vm367 = vcmp.ge.f32.partialorder %v364, 0.01
    %v368 = vsel %vm366, %v324, 0.0
    %v369 = vsel %vm367, %v364, 0.0
    %v370 = vmul.f32 %v368, 5.0
    %v371 = vmul.f32 %v369, 5.0
    %v372 = vtanh.pop %v370
    %v373 = vtanh.pop %v371
    %s374 = scalar_lea.vmem [#allocation7], 16
    %v375 = vld [vmem:[%s374] sm:$0xff]
    %v376 = vld [vmem:[%s374 + $0x8] sm:$0xff]
    %v377 = vadd.f32 %v372, %v375
    %v378 = vadd.f32 %v373, %v376
    %v379 = vmin.f32 %v377, 1.0
    %v380 = vmin.f32 %v378, 1.0
    %s381 = scalar_lea.vmem [#allocation8], 16
    %382 = vst [vmem:[%s381] sm:$0xff] %v379
    %383 = vst [vmem:[%s381 + $0x8] sm:$0xff] %v380
    %v384 = vld [vmem:[#allocation2] sm:$0xff]
    %v385 = vld [vmem:[#allocation2 + $0x8] sm:$0xff]
    %v386 = vld [vmem:[#allocation2 + $0x10] sm:$0xff]
    %v387 = vld [vmem:[#allocation2 + $0x18] sm:$0xff]
    %v388 = vld [vmem:[#allocation2 + $0x20] sm:$0xff]
    %v389 = vld [vmem:[#allocation2 + $0x28] sm:$0xff]
    %v390 = vld [vmem:[#allocation2 + $0x30] sm:$0xff]
    %v391 = vld [vmem:[#allocation2 + $0x38] sm:$0xff]
    %v392 = vld [vmem:[#allocation2 + $0x40] sm:$0xff]
    %v393 = vld [vmem:[#allocation2 + $0x48] sm:$0xff]
    %v394 = vld [vmem:[#allocation2 + $0x50] sm:$0xff]
    %v395 = vld [vmem:[#allocation2 + $0x58] sm:$0xff]
    %v396 = vld [vmem:[#allocation2 + $0x60] sm:$0xff]
    %v397 = vld [vmem:[#allocation2 + $0x68] sm:$0xff]
    %v398 = vld [vmem:[#allocation2 + $0x70] sm:$0xff]
    %v399 = vld [vmem:[#allocation2 + $0x78] sm:$0xff]
    %v400 = vld [vmem:[#allocation2 + $0x80] sm:$0xff]
    %v401 = vld [vmem:[#allocation2 + $0x88] sm:$0xff]
    %v402 = vld [vmem:[#allocation2 + $0x90] sm:$0xff]
    %v403 = vld [vmem:[#allocation2 + $0x98] sm:$0xff]
    %v404 = vld [vmem:[#allocation2 + $0xa0] sm:$0xff]
    %v405 = vld [vmem:[#allocation2 + $0xa8] sm:$0xff]
    %v406 = vld [vmem:[#allocation2 + $0xb0] sm:$0xff]
    %v407 = vld [vmem:[#allocation2 + $0xb8] sm:$0xff]
    %v408 = vld [vmem:[#allocation2 + $0xc0] sm:$0xff]
    %v409 = vld [vmem:[#allocation2 + $0xc8] sm:$0xff]
    %v410 = vld [vmem:[#allocation2 + $0xd0] sm:$0xff]
    %v411 = vld [vmem:[#allocation2 + $0xd8] sm:$0xff]
    %v412 = vld [vmem:[#allocation2 + $0xe0] sm:$0xff]
    %v413 = vld [vmem:[#allocation2 + $0xe8] sm:$0xff]
    %v414 = vld [vmem:[#allocation2 + $0xf0] sm:$0xff]
    %v415 = vld [vmem:[#allocation2 + $0xf8] sm:$0xff]
    %v416 = vld [vmem:[#allocation2 + $0x100] sm:$0xff]
    %v417 = vld [vmem:[#allocation2 + $0x108] sm:$0xff]
    %v418 = vld [vmem:[#allocation2 + $0x110] sm:$0xff]
    %v419 = vld [vmem:[#allocation2 + $0x118] sm:$0xff]
    %v420 = vld [vmem:[#allocation2 + $0x120] sm:$0xff]
    %v421 = vld [vmem:[#allocation2 + $0x128] sm:$0xff]
    %v422 = vld [vmem:[#allocation2 + $0x130] sm:$0xff]
    %v423 = vld [vmem:[#allocation2 + $0x138] sm:$0xff]
    %v424 = vld [vmem:[#allocation2 + $0x140] sm:$0xff]
    %v425 = vld [vmem:[#allocation2 + $0x148] sm:$0xff]
    %v426 = vld [vmem:[#allocation2 + $0x150] sm:$0xff]
    %v427 = vld [vmem:[#allocation2 + $0x158] sm:$0xff]
    %v428 = vld [vmem:[#allocation2 + $0x160] sm:$0xff]
    %v429 = vld [vmem:[#allocation2 + $0x168] sm:$0xff]
    %v430 = vld [vmem:[#allocation2 + $0x170] sm:$0xff]
    %v431 = vld [vmem:[#allocation2 + $0x178] sm:$0xff]
    %v432 = vld [vmem:[#allocation2 + $0x180] sm:$0xff]
    %v433 = vld [vmem:[#allocation2 + $0x188] sm:$0xff]
    %v434 = vld [vmem:[#allocation2 + $0x190] sm:$0xff]
    %v435 = vld [vmem:[#allocation2 + $0x198] sm:$0xff]
    %v436 = vld [vmem:[#allocation2 + $0x1a0] sm:$0xff]
    %v437 = vld [vmem:[#allocation2 + $0x1a8] sm:$0xff]
    %v438 = vld [vmem:[#allocation2 + $0x1b0] sm:$0xff]
    %v439 = vld [vmem:[#allocation2 + $0x1b8] sm:$0xff]
    %v440 = vld [vmem:[#allocation2 + $0x1c0] sm:$0xff]
    %v441 = vld [vmem:[#allocation2 + $0x1c8] sm:$0xff]
    %v442 = vld [vmem:[#allocation2 + $0x1d0] sm:$0xff]
    %v443 = vld [vmem:[#allocation2 + $0x1d8] sm:$0xff]
    %v444 = vld [vmem:[#allocation2 + $0x1e0] sm:$0xff]
    %v445 = vld [vmem:[#allocation2 + $0x1e8] sm:$0xff]
    %v446 = vld [vmem:[#allocation2 + $0x1f0] sm:$0xff]
    %v447 = vld [vmem:[#allocation2 + $0x1f8] sm:$0xff]
    %448 = vmatpush.msra.mxu0 %v414
    %449 = vmatpush.msra.mxu0 %v412
    %450 = vmatpush.msra.mxu0 %v410
    %451 = vmatpush.msra.mxu0 %v408
    %452 = vmatpush.msra.mxu0 %v406
    %453 = vmatpush.msra.mxu0 %v404
    %454 = vmatpush.msra.mxu0 %v402
    %455 = vmatpush.msra.mxu0 %v400
    %456 = vmatpush.msra.mxu0 %v398
    %457 = vmatpush.msra.mxu0 %v396
    %458 = vmatpush.msra.mxu0 %v394
    %459 = vmatpush.msra.mxu0 %v392
    %460 = vmatpush.msra.mxu0 %v390
    %461 = vmatpush.msra.mxu0 %v388
    %462 = vmatpush.msra.mxu0 %v386
    %463 = vmatpush.msra.mxu0 %v384
    %464 = vmatmul.f32.gmra.mxu0 %v379
    %v465 = vpop.f32.mrf.mxu0
    %v466 = vadd.f32 0.0, %v465
    %467 = vdwg.mxu0
    %468 = vmatpush.msra.mxu0 %v446
    %469 = vmatpush.msra.mxu0 %v444
    %470 = vmatpush.msra.mxu0 %v442
    %471 = vmatpush.msra.mxu0 %v440
    %472 = vmatpush.msra.mxu0 %v438
    %473 = vmatpush.msra.mxu0 %v436
    %474 = vmatpush.msra.mxu0 %v434
    %475 = vmatpush.msra.mxu0 %v432
    %476 = vmatpush.msra.mxu0 %v430
    %477 = vmatpush.msra.mxu0 %v428
    %478 = vmatpush.msra.mxu0 %v426
    %479 = vmatpush.msra.mxu0 %v424
    %480 = vmatpush.msra.mxu0 %v422
    %481 = vmatpush.msra.mxu0 %v420
    %482 = vmatpush.msra.mxu0 %v418
    %483 = vmatpush.msra.mxu0 %v416
    %484 = vmatmul.f32.gmra.mxu0 %v380
    %v485 = vpop.f32.mrf.mxu0
    %v486 = vadd.f32 %v466, %v485
    %487 = vdwg.mxu0
    %488 = vmatpush.msra.mxu0 %v415
    %489 = vmatpush.msra.mxu0 %v413
    %490 = vmatpush.msra.mxu0 %v411
    %491 = vmatpush.msra.mxu0 %v409
    %492 = vmatpush.msra.mxu0 %v407
    %493 = vmatpush.msra.mxu0 %v405
    %494 = vmatpush.msra.mxu0 %v403
    %495 = vmatpush.msra.mxu0 %v401
    %496 = vmatpush.msra.mxu0 %v399
    %497 = vmatpush.msra.mxu0 %v397
    %498 = vmatpush.msra.mxu0 %v395
    %499 = vmatpush.msra.mxu0 %v393
    %500 = vmatpush.msra.mxu0 %v391
    %501 = vmatpush.msra.mxu0 %v389
    %502 = vmatpush.msra.mxu0 %v387
    %503 = vmatpush.msra.mxu0 %v385
    %504 = vmatmul.f32.gmra.mxu0 %v379
    %v505 = vpop.f32.mrf.mxu0
    %v506 = vadd.f32 0.0, %v505
    %507 = vdwg.mxu0
    %508 = vmatpush.msra.mxu0 %v447
    %509 = vmatpush.msra.mxu0 %v445
    %510 = vmatpush.msra.mxu0 %v443
    %511 = vmatpush.msra.mxu0 %v441
    %512 = vmatpush.msra.mxu0 %v439
    %513 = vmatpush.msra.mxu0 %v437
    %514 = vmatpush.msra.mxu0 %v435
    %515 = vmatpush.msra.mxu0 %v433
    %516 = vmatpush.msra.mxu0 %v431
    %517 = vmatpush.msra.mxu0 %v429
    %518 = vmatpush.msra.mxu0 %v427
    %519 = vmatpush.msra.mxu0 %v425
    %520 = vmatpush.msra.mxu0 %v423
    %521 = vmatpush.msra.mxu0 %v421
    %522 = vmatpush.msra.mxu0 %v419
    %523 = vmatpush.msra.mxu0 %v417
    %524 = vmatmul.f32.gmra.mxu0 %v380
    %v525 = vpop.f32.mrf.mxu0
    %v526 = vadd.f32 %v506, %v525
    %527 = vdwg.mxu0
    %vm528 = vcmp.ge.f32.partialorder %v486, 0.01
    %vm529 = vcmp.ge.f32.partialorder %v526, 0.01
    %v530 = vsel %vm528, %v486, 0.0
    %v531 = vsel %vm529, %v526, 0.0
    %v532 = vmul.f32 %v530, 5.0
    %v533 = vmul.f32 %v531, 5.0
    %v534 = vtanh.pop %v532
    %v535 = vtanh.pop %v533
    %s536 = scalar_lea.vmem [#allocation7], 32
    %v537 = vld [vmem:[%s536] sm:$0xff]
    %v538 = vld [vmem:[%s536 + $0x8] sm:$0xff]
    %v539 = vadd.f32 %v534, %v537
    %v540 = vadd.f32 %v535, %v538
    %v541 = vmin.f32 %v539, 1.0
    %v542 = vmin.f32 %v540, 1.0
    %s543 = scalar_lea.vmem [#allocation8], 32
    %544 = vst [vmem:[%s543] sm:$0xff] %v541
    %545 = vst [vmem:[%s543 + $0x8] sm:$0xff] %v542
    %v546 = vld [vmem:[#allocation2] sm:$0xff]
    %v547 = vld [vmem:[#allocation2 + $0x8] sm:$0xff]
    %v548 = vld [vmem:[#allocation2 + $0x10] sm:$0xff]
    %v549 = vld [vmem:[#allocation2 + $0x18] sm:$0xff]
    %v550 = vld [vmem:[#allocation2 + $0x20] sm:$0xff]
    %v551 = vld [vmem:[#allocation2 + $0x28] sm:$0xff]
    %v552 = vld [vmem:[#allocation2 + $0x30] sm:$0xff]
    %v553 = vld [vmem:[#allocation2 + $0x38] sm:$0xff]
    %v554 = vld [vmem:[#allocation2 + $0x40] sm:$0xff]
    %v555 = vld [vmem:[#allocation2 + $0x48] sm:$0xff]
    %v556 = vld [vmem:[#allocation2 + $0x50] sm:$0xff]
    %v557 = vld [vmem:[#allocation2 + $0x58] sm:$0xff]
    %v558 = vld [vmem:[#allocation2 + $0x60] sm:$0xff]
    %v559 = vld [vmem:[#allocation2 + $0x68] sm:$0xff]
    %v560 = vld [vmem:[#allocation2 + $0x70] sm:$0xff]
    %v561 = vld [vmem:[#allocation2 + $0x78] sm:$0xff]
    %v562 = vld [vmem:[#allocation2 + $0x80] sm:$0xff]
    %v563 = vld [vmem:[#allocation2 + $0x88] sm:$0xff]
    %v564 = vld [vmem:[#allocation2 + $0x90] sm:$0xff]
    %v565 = vld [vmem:[#allocation2 + $0x98] sm:$0xff]
    %v566 = vld [vmem:[#allocation2 + $0xa0] sm:$0xff]
    %v567 = vld [vmem:[#allocation2 + $0xa8] sm:$0xff]
    %v568 = vld [vmem:[#allocation2 + $0xb0] sm:$0xff]
    %v569 = vld [vmem:[#allocation2 + $0xb8] sm:$0xff]
    %v570 = vld [vmem:[#allocation2 + $0xc0] sm:$0xff]
    %v571 = vld [vmem:[#allocation2 + $0xc8] sm:$0xff]
    %v572 = vld [vmem:[#allocation2 + $0xd0] sm:$0xff]
    %v573 = vld [vmem:[#allocation2 + $0xd8] sm:$0xff]
    %v574 = vld [vmem:[#allocation2 + $0xe0] sm:$0xff]
    %v575 = vld [vmem:[#allocation2 + $0xe8] sm:$0xff]
    %v576 = vld [vmem:[#allocation2 + $0xf0] sm:$0xff]
    %v577 = vld [vmem:[#allocation2 + $0xf8] sm:$0xff]
    %v578 = vld [vmem:[#allocation2 + $0x100] sm:$0xff]
    %v579 = vld [vmem:[#allocation2 + $0x108] sm:$0xff]
    %v580 = vld [vmem:[#allocation2 + $0x110] sm:$0xff]
    %v581 = vld [vmem:[#allocation2 + $0x118] sm:$0xff]
    %v582 = vld [vmem:[#allocation2 + $0x120] sm:$0xff]
    %v583 = vld [vmem:[#allocation2 + $0x128] sm:$0xff]
    %v584 = vld [vmem:[#allocation2 + $0x130] sm:$0xff]
    %v585 = vld [vmem:[#allocation2 + $0x138] sm:$0xff]
    %v586 = vld [vmem:[#allocation2 + $0x140] sm:$0xff]
    %v587 = vld [vmem:[#allocation2 + $0x148] sm:$0xff]
    %v588 = vld [vmem:[#allocation2 + $0x150] sm:$0xff]
    %v589 = vld [vmem:[#allocation2 + $0x158] sm:$0xff]
    %v590 = vld [vmem:[#allocation2 + $0x160] sm:$0xff]
    %v591 = vld [vmem:[#allocation2 + $0x168] sm:$0xff]
    %v592 = vld [vmem:[#allocation2 + $0x170] sm:$0xff]
    %v593 = vld [vmem:[#allocation2 + $0x178] sm:$0xff]
    %v594 = vld [vmem:[#allocation2 + $0x180] sm:$0xff]
    %v595 = vld [vmem:[#allocation2 + $0x188] sm:$0xff]
    %v596 = vld [vmem:[#allocation2 + $0x190] sm:$0xff]
    %v597 = vld [vmem:[#allocation2 + $0x198] sm:$0xff]
    %v598 = vld [vmem:[#allocation2 + $0x1a0] sm:$0xff]
    %v599 = vld [vmem:[#allocation2 + $0x1a8] sm:$0xff]
    %v600 = vld [vmem:[#allocation2 + $0x1b0] sm:$0xff]
    %v601 = vld [vmem:[#allocation2 + $0x1b8] sm:$0xff]
    %v602 = vld [vmem:[#allocation2 + $0x1c0] sm:$0xff]
    %v603 = vld [vmem:[#allocation2 + $0x1c8] sm:$0xff]
    %v604 = vld [vmem:[#allocation2 + $0x1d0] sm:$0xff]
    %v605 = vld [vmem:[#allocation2 + $0x1d8] sm:$0xff]
    %v606 = vld [vmem:[#allocation2 + $0x1e0] sm:$0xff]
    %v607 = vld [vmem:[#allocation2 + $0x1e8] sm:$0xff]
    %v608 = vld [vmem:[#allocation2 + $0x1f0] sm:$0xff]
    %v609 = vld [vmem:[#allocation2 + $0x1f8] sm:$0xff]
    %610 = vmatpush.msra.mxu0 %v576
    %611 = vmatpush.msra.mxu0 %v574
    %612 = vmatpush.msra.mxu0 %v572
    %613 = vmatpush.msra.mxu0 %v570
    %614 = vmatpush.msra.mxu0 %v568
    %615 = vmatpush.msra.mxu0 %v566
    %616 = vmatpush.msra.mxu0 %v564
    %617 = vmatpush.msra.mxu0 %v562
    %618 = vmatpush.msra.mxu0 %v560
    %619 = vmatpush.msra.mxu0 %v558
    %620 = vmatpush.msra.mxu0 %v556
    %621 = vmatpush.msra.mxu0 %v554
    %622 = vmatpush.msra.mxu0 %v552
    %623 = vmatpush.msra.mxu0 %v550
    %624 = vmatpush.msra.mxu0 %v548
    %625 = vmatpush.msra.mxu0 %v546
    %626 = vmatmul.f32.gmra.mxu0 %v541
    %v627 = vpop.f32.mrf.mxu0
    %v628 = vadd.f32 0.0, %v627
    %629 = vdwg.mxu0
    %630 = vmatpush.msra.mxu0 %v608
    %631 = vmatpush.msra.mxu0 %v606
    %632 = vmatpush.msra.mxu0 %v604
    %633 = vmatpush.msra.mxu0 %v602
    %634 = vmatpush.msra.mxu0 %v600
    %635 = vmatpush.msra.mxu0 %v598
    %636 = vmatpush.msra.mxu0 %v596
    %637 = vmatpush.msra.mxu0 %v594
    %638 = vmatpush.msra.mxu0 %v592
    %639 = vmatpush.msra.mxu0 %v590
    %640 = vmatpush.msra.mxu0 %v588
    %641 = vmatpush.msra.mxu0 %v586
    %642 = vmatpush.msra.mxu0 %v584
    %643 = vmatpush.msra.mxu0 %v582
    %644 = vmatpush.msra.mxu0 %v580
    %645 = vmatpush.msra.mxu0 %v578
    %646 = vmatmul.f32.gmra.mxu0 %v542
    %v647 = vpop.f32.mrf.mxu0
    %v648 = vadd.f32 %v628, %v647
    %649 = vdwg.mxu0
    %650 = vmatpush.msra.mxu0 %v577
    %651 = vmatpush.msra.mxu0 %v575
    %652 = vmatpush.msra.mxu0 %v573
    %653 = vmatpush.msra.mxu0 %v571
    %654 = vmatpush.msra.mxu0 %v569
    %655 = vmatpush.msra.mxu0 %v567
    %656 = vmatpush.msra.mxu0 %v565
    %657 = vmatpush.msra.mxu0 %v563
    %658 = vmatpush.msra.mxu0 %v561
    %659 = vmatpush.msra.mxu0 %v559
    %660 = vmatpush.msra.mxu0 %v557
    %661 = vmatpush.msra.mxu0 %v555
    %662 = vmatpush.msra.mxu0 %v553
    %663 = vmatpush.msra.mxu0 %v551
    %664 = vmatpush.msra.mxu0 %v549
    %665 = vmatpush.msra.mxu0 %v547
    %666 = vmatmul.f32.gmra.mxu0 %v541
    %v667 = vpop.f32.mrf.mxu0
    %v668 = vadd.f32 0.0, %v667
    %669 = vdwg.mxu0
    %670 = vmatpush.msra.mxu0 %v609
    %671 = vmatpush.msra.mxu0 %v607
    %672 = vmatpush.msra.mxu0 %v605
    %673 = vmatpush.msra.mxu0 %v603
    %674 = vmatpush.msra.mxu0 %v601
    %675 = vmatpush.msra.mxu0 %v599
    %676 = vmatpush.msra.mxu0 %v597
    %677 = vmatpush.msra.mxu0 %v595
    %678 = vmatpush.msra.mxu0 %v593
    %679 = vmatpush.msra.mxu0 %v591
    %680 = vmatpush.msra.mxu0 %v589
    %681 = vmatpush.msra.mxu0 %v587
    %682 = vmatpush.msra.mxu0 %v585
    %683 = vmatpush.msra.mxu0 %v583
    %684 = vmatpush.msra.mxu0 %v581
    %685 = vmatpush.msra.mxu0 %v579
    %686 = vmatmul.f32.gmra.mxu0 %v542
    %v687 = vpop.f32.mrf.mxu0
    %v688 = vadd.f32 %v668, %v687
    %689 = vdwg.mxu0
    %vm690 = vcmp.ge.f32.partialorder %v648, 0.01
    %vm691 = vcmp.ge.f32.partialorder %v688, 0.01
    %v692 = vsel %vm690, %v648, 0.0
    %v693 = vsel %vm691, %v688, 0.0
    %v694 = vmul.f32 %v692, 5.0
    %v695 = vmul.f32 %v693, 5.0
    %v696 = vtanh.pop %v694
    %v697 = vtanh.pop %v695
    %s698 = scalar_lea.vmem [#allocation7], 48
    %v699 = vld [vmem:[%s698] sm:$0xff]
    %v700 = vld [vmem:[%s698 + $0x8] sm:$0xff]
    %v701 = vadd.f32 %v696, %v699
    %v702 = vadd.f32 %v697, %v700
    %v703 = vmin.f32 %v701, 1.0
    %v704 = vmin.f32 %v702, 1.0
    %s705 = scalar_lea.vmem [#allocation8], 48
    %706 = vst [vmem:[%s705] sm:$0xff] %v703
    %707 = vst [vmem:[%s705 + $0x8] sm:$0xff] %v704
    // Predicated region
    $region26: #{tpu_custom_call.1} parent=1 // pred_check
      _
    $region27: #{tpu_custom_call.1} parent=1 // pred_check_branch
      %709 = sbr.rel (0) target = $region29
    $region28: #{tpu_custom_call.1} parent=1 // pred_region
      %711 = vsyncadd [#allocation4], 0
      %s712 = sshll.u32 [#allocation8], 4
      %s713 = int_to_ptr.vmem [resolvable:$true] %s712
      %s714 = sshll.u32 %s3, 4
      %s715 = int_to_ptr.hbm [resolvable:$true] %s714
      %720 = dma.vmem_to_hbm [thread:$0]  %s713, 1024, %s715, [#allocation4], 256, 256, 16
    $region29: #{tpu_custom_call.1} parent=1 // pred_fallthru
      _
    // Predicated region
    $region30: #{tpu_custom_call.1} parent=1 // pred_check
      _
    $region31: #{tpu_custom_call.1} parent=1 // pred_check_branch
      %722 = sbr.rel (0) target = $region33
    $region32: #{tpu_custom_call.1} parent=1 // pred_region
      %724 = dma.done [#allocation4], 1024
    $region33: #{tpu_custom_call.1} parent=1 // pred_fallthru
      _
    %725 = vsyncpa [#allocation3], 1
    %726 = vsyncpa [#allocation6], 1
    %727 = vsyncpa [#allocation4], 1

</llo_original>
